<compile_context>
chip_gen: v5e
topology: v5e:2x2
jax: 0.10.0
libtpu: 0.0.40
codegen_flags: <defaults>
</compile_context>

<pallas_src>
import functools

import jax
import jax.numpy as jnp
from jax.experimental import pallas as pl
from jax.experimental.pallas import tpu as pltpu


def _sum_layer_kernel(x_ref, rhs_ref, expand_ref, o_ref, *, P, I):
    # x_ref:      (bt, P*I)          batch tile, partitions packed along lanes
    # rhs_ref:    (P*I, PO_pad)      block-diagonal softmax(weight), K-major
    # expand_ref: (P, P*I + PO_pad)  one-hot max-expansion matrix
    # o_ref:      (bt, PO_pad)       lane-dense output tile
    PI = P * I
    x = x_ref[...].astype(jnp.float32)                         # (bt, PI)

    # --- per-partition max (matches reference logsumexp numerics) ---------
    m_cols = [jnp.max(x[:, p * I:(p + 1) * I], axis=-1, keepdims=True)
              for p in range(P)]                               # P x (bt, 1)
    m = jnp.concatenate(m_cols, axis=-1)                       # (bt, P)
    # Guard all-(-inf) partitions: keeps the expansion matmul NaN-free and
    # still yields -inf in the output (0 + log(0)).
    m = jnp.where(m == -jnp.inf, jnp.float32(0.0), m)

    # --- tiny K=P one-hot expansion matmul on the MXU ---------------------
    # m_exp[:, :PI]  = m repeated I times per partition (for the exp shift)
    # m_exp[:, PI:]  = m repeated O times per partition (for the add-back),
    #                  zeros in the padded output lanes.
    m_exp = jnp.dot(m, expand_ref[...],
                    preferred_element_type=jnp.float32,
                    precision=jax.lax.Precision.HIGHEST)       # (bt, PI+PO_pad)
    m_xi = m_exp[:, :PI]                                       # (bt, PI)
    m_po = m_exp[:, PI:]                                       # (bt, PO_pad)

    # --- lane-dense exp, single fused block-diagonal matmul, lane-dense log
    e = jnp.exp(x - m_xi)                                      # (bt, PI), <= 1
    acc = jnp.dot(e, rhs_ref[...],
                  preferred_element_type=jnp.float32,
                  precision=jax.lax.Precision.HIGHEST)         # (bt, PO_pad)
    # Padded lanes have acc == 0 -> -inf; the wrapper slice drops them.
    o_ref[...] = (m_po + jnp.log(acc)).astype(o_ref.dtype)     # full-width store


def sum_layer_forward(x, weight, *, max_b_tile=2048):
    """x: (B, P, I) float32, weight: (P, O, I) float32 -> (B, P, O) float32."""
    B, P, I = x.shape
    P_w, O, I_w = weight.shape
    assert P == P_w and I == I_w

    PI = P * I
    PO = P * O
    PO_pad = ((PO + 127) // 128) * 128               # lane-dense output width

    # ---- one-time, batch-independent weight staging (tiny) ----------------
    sw = jax.nn.softmax(weight.astype(jnp.float32), axis=2)          # (P, O, I)
    swT = jnp.swapaxes(sw, 1, 2)                                     # (P, I, O)
    eyeP = jnp.eye(P, dtype=jnp.float32)
    # rhs[p*I + i, p*O + o] = sw[p, o, i]; zero off-diagonal & padded columns.
    rhs = (swT[:, :, None, :] * eyeP[:, None, :, None]).reshape(PI, PO)
    rhs = jnp.pad(rhs, ((0, 0), (0, PO_pad - PO)))                   # (PI, PO_pad)
    e_xi = jnp.repeat(eyeP, I, axis=1)                               # (P, PI)
    e_po = jnp.pad(jnp.repeat(eyeP, O, axis=1),
                   ((0, 0), (0, PO_pad - PO)))                       # (P, PO_pad)
    expand = jnp.concatenate([e_xi, e_po], axis=1)                   # (P, PI+PO_pad)

    # Free, contiguous reshape (no transpose): partitions packed along lanes.
    x2 = x.reshape(B, PI).astype(jnp.float32)

    # ---- batch tiling (no wrapper pad; ragged last tile is masked) --------
    bt = min(B, max_b_tile)
    if B > 256:
        # At least two grid steps so a 2-TC chip (v7x) shards the batch axis.
        bt = min(bt, ((B + 1) // 2 + 7) // 8 * 8)
    num_tiles = pl.cdiv(B, bt)

    kernel = functools.partial(_sum_layer_kernel, P=P, I=I)

    out_pad = pl.pallas_call(
        kernel,
        out_shape=jax.ShapeDtypeStruct((B, PO_pad), jnp.float32),
        grid_spec=pltpu.PrefetchScalarGridSpec(
            num_scalar_prefetch=0,
            grid=(num_tiles,),
            in_specs=[
                pl.BlockSpec((bt, PI), lambda b: (b, 0)),
                # Constant block index -> staged weights resident in VMEM.
                pl.BlockSpec((PI, PO_pad), lambda b: (0, 0)),
                pl.BlockSpec((P, PI + PO_pad), lambda b: (0, 0)),
            ],
            out_specs=pl.BlockSpec((bt, PO_pad), lambda b: (b, 0)),
        ),
        compiler_params=pltpu.CompilerParams(
            dimension_semantics=("parallel",)),
    )(x2, rhs, expand)

    # Cheap slice (no-op when PO is already a multiple of 128) + free reshape.
    out = out_pad if PO_pad == PO else out_pad[:, :PO]
    return out.reshape(B, P, O)


def sum_layer_reference(x, weight):
    """Pure-JAX reference matching the PyTorch forward exactly."""
    w = jax.nn.log_softmax(weight, axis=2)                 # (P, O, I)
    xe = x[:, :, None, :]                                   # (B, P, 1, I)
    return jax.scipy.special.logsumexp(xe + w, axis=-1)     # (B, P, O)


if __name__ == "__main__":
    # Module hyperparameters (small, consistent with SumLayer.__init__):
    in_partitions = 4   # P
    in_nodes = 32       # I
    out_nodes = 16      # O
    batch = 8           # B

    key = jax.random.PRNGKey(0)
    kx, kw = jax.random.split(key)

    # Inputs are log-probabilities coming from a previous layer.
    x = jax.random.normal(kx, (batch, in_partitions, in_nodes), jnp.float32) - 1.0
    # weight ~ Normal(0, 0.1), matching torch.normal(0.0, 0.1, [P, O, I]).
    weight = 0.1 * jax.random.normal(
        kw, (in_partitions, out_nodes, in_nodes), jnp.float32)

    out = sum_layer_forward(x, weight)
    out = jax.block_until_ready(out)

    ref = sum_layer_reference(x, weight)
    assert out.shape == (batch, in_partitions, out_nodes)
    assert jnp.allclose(out, ref, atol=1e-5, rtol=1e-5), "mismatch vs reference"

    print("KERNEL_OK")
</pallas_src>

<mosaic_0001>
module attributes {stable_mosaic.version = 11 : i64} {
  func.func @_sum_layer_kernel(%arg0: i32, %arg1: memref<8x128xf32, #tpu.memory_space<vmem>>, %arg2: memref<128x128xf32, #tpu.memory_space<vmem>>, %arg3: memref<4x256xf32, #tpu.memory_space<vmem>>, %arg4: memref<8x128xf32, #tpu.memory_space<vmem>>) attributes {dimension_semantics = [#tpu.dimension_semantics<parallel>], iteration_bounds = array<i64: 1>, scalar_prefetch = 0 : i64, scratch_operands = 0 : i64, tpu.core_type = #tpu.core_type<tc>, window_params = [{transform_indices = @transform_0, window_bounds = array<i64: 8, 128>}, {pipeline_mode = #tpu.pipeline_mode<synchronous>, transform_indices = @transform_1, window_bounds = array<i64: 128, 128>}, {pipeline_mode = #tpu.pipeline_mode<synchronous>, transform_indices = @transform_2, window_bounds = array<i64: 4, 256>}, {transform_indices = @transform_3, window_bounds = array<i64: 8, 128>}]} {
    %c0 = arith.constant 0 : index
    %c0_0 = arith.constant 0 : index
    %0 = vector.load %arg1[%c0, %c0_0] : memref<8x128xf32, #tpu.memory_space<vmem>>, vector<8x128xf32>
    %1 = vector.extract_strided_slice %0 {offsets = [0, 0], sizes = [8, 32], strides = [1, 1]} : vector<8x128xf32> to vector<8x32xf32>
    %cst = arith.constant dense<0xFF800000> : vector<8xf32>
    %2 = vector.multi_reduction <maximumf>, %1, %cst [1] : vector<8x32xf32> to vector<8xf32>
    %3 = vector.shape_cast %2 : vector<8xf32> to vector<8x1xf32>
    %4 = vector.extract_strided_slice %0 {offsets = [0, 32], sizes = [8, 32], strides = [1, 1]} : vector<8x128xf32> to vector<8x32xf32>
    %cst_1 = arith.constant dense<0xFF800000> : vector<8xf32>
    %5 = vector.multi_reduction <maximumf>, %4, %cst_1 [1] : vector<8x32xf32> to vector<8xf32>
    %6 = vector.shape_cast %5 : vector<8xf32> to vector<8x1xf32>
    %7 = vector.extract_strided_slice %0 {offsets = [0, 64], sizes = [8, 32], strides = [1, 1]} : vector<8x128xf32> to vector<8x32xf32>
    %cst_2 = arith.constant dense<0xFF800000> : vector<8xf32>
    %8 = vector.multi_reduction <maximumf>, %7, %cst_2 [1] : vector<8x32xf32> to vector<8xf32>
    %9 = vector.shape_cast %8 : vector<8xf32> to vector<8x1xf32>
    %10 = vector.extract_strided_slice %0 {offsets = [0, 96], sizes = [8, 32], strides = [1, 1]} : vector<8x128xf32> to vector<8x32xf32>
    %cst_3 = arith.constant dense<0xFF800000> : vector<8xf32>
    %11 = vector.multi_reduction <maximumf>, %10, %cst_3 [1] : vector<8x32xf32> to vector<8xf32>
    %12 = vector.shape_cast %11 : vector<8xf32> to vector<8x1xf32>
    %13 = tpu.concatenate %3, %6, %9, %12 in 1 : vector<8x1xf32>, vector<8x1xf32>, vector<8x1xf32>, vector<8x1xf32> -> vector<8x4xf32>
    %cst_4 = arith.constant 0xFF800000 : f32
    %14 = vector.broadcast %cst_4 : f32 to vector<8x4xf32>
    %15 = arith.cmpf oeq, %13, %14 : vector<8x4xf32>
    %cst_5 = arith.constant 0.000000e+00 : f32
    %16 = vector.broadcast %cst_5 : f32 to vector<8x4xf32>
    %17 = arith.select %15, %16, %13 : vector<8x4xi1>, vector<8x4xf32>
    %c0_6 = arith.constant 0 : index
    %c0_7 = arith.constant 0 : index
    %18 = vector.load %arg3[%c0_6, %c0_7] : memref<4x256xf32, #tpu.memory_space<vmem>>, vector<4x256xf32>
    %cst_8 = arith.constant dense<0.000000e+00> : vector<8x256xf32>
    %19 = tpu.matmul %17, %18, %cst_8 {dimension_numbers = #tpu.dot_dimension_numbers<[1], [0], [0], [1], [0, 0, 1, 1], [], []>, precision = #tpu.contract_precision<fp32>} : vector<8x4xf32>, vector<4x256xf32>, vector<8x256xf32> -> vector<8x256xf32>
    %20 = vector.extract_strided_slice %19 {offsets = [0, 0], sizes = [8, 128], strides = [1, 1]} : vector<8x256xf32> to vector<8x128xf32>
    %21 = vector.extract_strided_slice %19 {offsets = [0, 128], sizes = [8, 128], strides = [1, 1]} : vector<8x256xf32> to vector<8x128xf32>
    %22 = arith.subf %0, %20 : vector<8x128xf32>
    %23 = math.exp %22 : vector<8x128xf32>
    %c0_9 = arith.constant 0 : index
    %c0_10 = arith.constant 0 : index
    %24 = vector.load %arg2[%c0_9, %c0_10] : memref<128x128xf32, #tpu.memory_space<vmem>>, vector<128x128xf32>
    %cst_11 = arith.constant dense<0.000000e+00> : vector<8x128xf32>
    %25 = tpu.matmul %23, %24, %cst_11 {dimension_numbers = #tpu.dot_dimension_numbers<[1], [0], [0], [1], [0, 0, 1, 1], [], []>, precision = #tpu.contract_precision<fp32>} : vector<8x128xf32>, vector<128x128xf32>, vector<8x128xf32> -> vector<8x128xf32>
    %26 = math.log %25 : vector<8x128xf32>
    %27 = arith.addf %21, %26 : vector<8x128xf32>
    %c0_12 = arith.constant 0 : index
    %c0_13 = arith.constant 0 : index
    %28 = vector.load %arg4[%c0_12, %c0_13] : memref<8x128xf32, #tpu.memory_space<vmem>>, vector<8x128xf32>
    tpu.vector_store %arg4[%c0_12, %c0_13], %27 {strides = array<i32>} : memref<8x128xf32, #tpu.memory_space<vmem>>, vector<8x128xf32>,
    return
  }
  func.func @transform_0(%arg0: i32) -> (i32, i32) {
    %c0_i32 = arith.constant 0 : i32
    %c0_i32_0 = arith.constant 0 : i32
    return %arg0, %c0_i32 : i32, i32
  }
  func.func @transform_1(%arg0: i32) -> (i32, i32) {
    %c0_i32 = arith.constant 0 : i32
    %c0_i32_0 = arith.constant 0 : i32
    %c0_i32_1 = arith.constant 0 : i32
    return %c0_i32, %c0_i32_0 : i32, i32
  }
  func.func @transform_2(%arg0: i32) -> (i32, i32) {
    %c0_i32 = arith.constant 0 : i32
    %c0_i32_0 = arith.constant 0 : i32
    %c0_i32_1 = arith.constant 0 : i32
    return %c0_i32, %c0_i32_0 : i32, i32
  }
  func.func @transform_3(%arg0: i32) -> (i32, i32) {
    %c0_i32 = arith.constant 0 : i32
    %c0_i32_0 = arith.constant 0 : i32
    return %arg0, %c0_i32 : i32, i32
  }
}

</mosaic_0001>

<llo_original>
// kernel: tpu_custom_call.1
$region0: #{tpu_custom_call.1}
  #allocation0 [shape = 'u32[]', space=smem, size = 0x4, offset = 0x4, fixed_abs, tag = 'smem constant byte address 0x4 - core index']
  #allocation1 [shape = 'u32[72,128]{1,0:T(1,128)}', space=vmem, size = 0x9000, scoped, tag = 'internal scratch']
  %s0 = inlined_call_operand.hbm [shape: f32[8,128], index: 0, kind: input, shape index: {}]
  %s1 = inlined_call_operand.hbm [shape: f32[128,128], index: 1, kind: input, shape index: {}]
  %s2 = inlined_call_operand.hbm [shape: f32[4,256], index: 2, kind: input, shape index: {}]
  %s3 = inlined_call_operand.hbm [shape: f32[8,128], index: 3, kind: output, shape index: {}]
  %s4 = sld [smem:[#allocation0]]
  $region34: #{tpu_custom_call.1} parent=0
    _
  %s6 = ssub.s32 1, %s4
  %s7 = scalar_select 0, %s6, %s4
  $region1: #{tpu_custom_call.1} parent=0
    #allocation2 [shape = 'u8[4096]{0}', space=vmem, size = 0x1000, scoped, tag = 'input window, operand 0, single buffered']
    #allocation3 [shape = 's32[1]{0}', space=sflag, size = 0x4, scoped, tag = 'scoped memory for tpu_custom_call.1']
    #allocation4 [shape = 's32[1]{0}', space=sflag, size = 0x4, scoped, tag = 'scoped memory for tpu_custom_call.1']
    #allocation5 [shape = 'u8[65536]{0}', space=vmem, size = 0x10000, scoped, tag = 'input window, operand 1, single buffered']
    #allocation6 [shape = 's32[1]{0}', space=sflag, size = 0x4, scoped, tag = 'scoped memory for tpu_custom_call.1']
    #allocation7 [shape = 'u8[4096]{0}', space=vmem, size = 0x1000, scoped, tag = 'input window, operand 2, single buffered']
    #allocation8 [shape = 'u8[4096]{0}', space=vmem, size = 0x1000, scoped, tag = 'output window, operand 0, single buffered']
    %8 = vsyncpa [#allocation3], 0
    %9 = vsyncpa [#allocation6], 0
    %10 = vsyncpa [#allocation4], 0
    // Predicated region
    $region2: #{tpu_custom_call.1} parent=1 // pred_check
      _
    $region3: #{tpu_custom_call.1} parent=1 // pred_check_branch
      %12 = sbr.rel (0) target = $region5
    $region4: #{tpu_custom_call.1} parent=1 // pred_region
      %14 = vsyncadd [#allocation3], 0
      %s16 = sshll.u32 %s0, 4
      %s17 = int_to_ptr.hbm [resolvable:$true] %s16
      %s18 = sshll.u32 [#allocation2], 4
      %s19 = int_to_ptr.vmem [resolvable:$true] %s18
      %21 = dma.hbm_to_vmem [thread:$0]  %s17, 128, %s19, [#allocation3]
    $region5: #{tpu_custom_call.1} parent=1 // pred_fallthru
      _
    // Predicated region
    $region6: #{tpu_custom_call.1} parent=1 // pred_check
      _
    $region7: #{tpu_custom_call.1} parent=1 // pred_check_branch
      %23 = sbr.rel (0) target = $region9
    $region8: #{tpu_custom_call.1} parent=1 // pred_region
      %25 = vsyncadd [#allocation6], 0
      %s26 = sshll.u32 %s1, 4
      %s27 = int_to_ptr.hbm [resolvable:$true] %s26
      %s28 = sshll.u32 [#allocation5], 4
      %s29 = int_to_ptr.vmem [resolvable:$true] %s28
      %34 = dma.hbm_to_vmem [thread:$0]  %s27, 2048, %s29, [#allocation6], 128, 128, 8
    $region9: #{tpu_custom_call.1} parent=1 // pred_fallthru
      _
    // Predicated region
    $region10: #{tpu_custom_call.1} parent=1 // pred_check
      _
    $region11: #{tpu_custom_call.1} parent=1 // pred_check_branch
      %36 = sbr.rel (0) target = $region13
    $region12: #{tpu_custom_call.1} parent=1 // pred_region
      %38 = vsyncadd [#allocation6], 0
      %s40 = sshll.u32 %s2, 4
      %s41 = int_to_ptr.hbm [resolvable:$true] %s40
      %s42 = sshll.u32 [#allocation7], 4
      %s43 = int_to_ptr.vmem [resolvable:$true] %s42
      %45 = dma.hbm_to_vmem [thread:$0]  %s41, 128, %s43, [#allocation6]
    $region13: #{tpu_custom_call.1} parent=1 // pred_fallthru
      _
    // Predicated region
    $region14: #{tpu_custom_call.1} parent=1 // pred_check
      _
    $region15: #{tpu_custom_call.1} parent=1 // pred_check_branch
      %47 = sbr.rel (0) target = $region17
    $region16: #{tpu_custom_call.1} parent=1 // pred_region
      %49 = dma.done [#allocation3], 128
    $region17: #{tpu_custom_call.1} parent=1 // pred_fallthru
      _
    // Predicated region
    $region18: #{tpu_custom_call.1} parent=1 // pred_check
      _
    $region19: #{tpu_custom_call.1} parent=1 // pred_check_branch
      %51 = sbr.rel (0) target = $region21
    $region20: #{tpu_custom_call.1} parent=1 // pred_region
      %53 = dma.done [#allocation6], 2048
    $region21: #{tpu_custom_call.1} parent=1 // pred_fallthru
      _
    // Predicated region
    $region22: #{tpu_custom_call.1} parent=1 // pred_check
      _
    $region23: #{tpu_custom_call.1} parent=1 // pred_check_branch
      %55 = sbr.rel (0) target = $region25
    $region24: #{tpu_custom_call.1} parent=1 // pred_region
      %57 = dma.done [#allocation6], 128
    $region25: #{tpu_custom_call.1} parent=1 // pred_fallthru
      _
    %v58 = vld [vmem:[#allocation2] sm:$0xff]
    %vm59 = vcmask 261120
    %v60 = vsel %vm59, %v58, -inf
    %61 = vmax.xlane.f32.xlu0 %v60
    %v62 = vpop.xlane.xlu0 %61
    %vm63 = vcmask 523520
    %v64 = vsel %vm63, %v58, -inf
    %65 = vmax.xlane.f32.xlu0 %v64
    %v66 = vpop.xlane.xlu0 %65
    %vm67 = vcmask 785920
    %v68 = vsel %vm67, %v58, -inf
    %69 = vmax.xlane.f32.xlu0 %v68
    %v70 = vpop.xlane.xlu0 %69
    %vm71 = vcmask 1048320
    %v72 = vsel %vm71, %v58, -inf
    %73 = vmax.xlane.f32.xlu0 %v72
    %v74 = vpop.xlane.xlu0 %73
    %vm75 = vcmask 7168
    %v76 = vsel %vm75, %v62, %v66
    %vm77 = vcmask 15360
    %v78 = vsel %vm77, %v76, %v70
    %vm79 = vcmask 23552
    %v80 = vsel %vm79, %v78, %v74
    %vm81 = vcmp.eq.f32.partialorder %v80, -inf
    %v82 = vsel %vm81, 0.0, %v80
    %v83 = vld [vmem:[#allocation7] sm:$0xff]
    %85 = vst [vmem:[#allocation1] ss:$2 sm:$0xff] %v83
    %v86 = vld.sshfl [vmem:[#allocation1] sm:$0xff pattern:$0x75316420]
    %v87 = vld.sshfl [vmem:[#allocation1 + $0x8] sm:$0xff pattern:$0x75316420]
    %vm88 = vcmask 31744
    %v90 = vsel %vm88, %v82, 0
    %vm92 = vcmask 1043456
    %v93 = vsel %vm92, %v86, 0
    %v95 = vsel %vm92, %v87, 0
    %97 = vmatpush.msra.mxu0 0.0
    %98 = vmatpush.msra.mxu0 0.0
    %99 = vmatpush.msra.mxu0 0.0
    %100 = vmatpush.msra.mxu0 0.0
    %101 = vmatpush.msra.mxu0 0.0
    %102 = vmatpush.msra.mxu0 0.0
    %103 = vmatpush.msra.mxu0 0.0
    %104 = vmatpush.msra.mxu0 0.0
    %105 = vmatpush.msra.mxu0 0.0
    %106 = vmatpush.msra.mxu0 0.0
    %107 = vmatpush.msra.mxu0 0.0
    %108 = vmatpush.msra.mxu0 0.0
    %109 = vmatpush.msra.mxu0 0.0
    %110 = vmatpush.msra.mxu0 0.0
    %111 = vmatpush.msra.mxu0 0.0
    %v112 = vand.u32 %v93, 4294901760
    %113 = vmatpush.msra.mxu0 %v112
    %v114 = vand.u32 %v90, 4294901760
    %v115 = vsub.f32 %v90, %v114
    %v116 = vand.u32 %v115, 4294901760
    %v117 = vsub.f32 %v115, %v116
    %v118 = vand.u32 %v117, 4294901760
    %119 = vmatmul.f32.gmra.mxu0 %v118
    %v120 = vpop.f32.mrf.mxu0
    %v121 = vadd.f32 0.0, %v120
    %122 = vdwg.mxu0
    %123 = vmatpush.msra.mxu0 0.0
    %124 = vmatpush.msra.mxu0 0.0
    %125 = vmatpush.msra.mxu0 0.0
    %126 = vmatpush.msra.mxu0 0.0
    %127 = vmatpush.msra.mxu0 0.0
    %128 = vmatpush.msra.mxu0 0.0
    %129 = vmatpush.msra.mxu0 0.0
    %130 = vmatpush.msra.mxu0 0.0
    %131 = vmatpush.msra.mxu0 0.0
    %132 = vmatpush.msra.mxu0 0.0
    %133 = vmatpush.msra.mxu0 0.0
    %134 = vmatpush.msra.mxu0 0.0
    %135 = vmatpush.msra.mxu0 0.0
    %136 = vmatpush.msra.mxu0 0.0
    %137 = vmatpush.msra.mxu0 0.0
    %v138 = vand.u32 %v93, 4294901760
    %v139 = vsub.f32 %v93, %v138
    %v140 = vand.u32 %v139, 4294901760
    %v141 = vsub.f32 %v139, %v140
    %v142 = vand.u32 %v141, 4294901760
    %143 = vmatpush.msra.mxu0 %v142
    %v144 = vand.u32 %v90, 4294901760
    %145 = vmatmul.f32.gmra.mxu0 %v144
    %v146 = vpop.f32.mrf.mxu0
    %v147 = vadd.f32 %v121, %v146
    %148 = vdwg.mxu0
    %149 = vmatpush.msra.mxu0 0.0
    %150 = vmatpush.msra.mxu0 0.0
    %151 = vmatpush.msra.mxu0 0.0
    %152 = vmatpush.msra.mxu0 0.0
    %153 = vmatpush.msra.mxu0 0.0
    %154 = vmatpush.msra.mxu0 0.0
    %155 = vmatpush.msra.mxu0 0.0
    %156 = vmatpush.msra.mxu0 0.0
    %157 = vmatpush.msra.mxu0 0.0
    %158 = vmatpush.msra.mxu0 0.0
    %159 = vmatpush.msra.mxu0 0.0
    %160 = vmatpush.msra.mxu0 0.0
    %161 = vmatpush.msra.mxu0 0.0
    %162 = vmatpush.msra.mxu0 0.0
    %163 = vmatpush.msra.mxu0 0.0
    %v164 = vand.u32 %v93, 4294901760
    %v165 = vsub.f32 %v93, %v164
    %166 = vmatpush.msra.mxu0 %v165
    %v167 = vand.u32 %v90, 4294901760
    %v168 = vsub.f32 %v90, %v167
    %169 = vmatmul.f32.gmra.mxu0 %v168
    %v170 = vpop.f32.mrf.mxu0
    %v171 = vadd.f32 %v147, %v170
    %172 = vdwg.mxu0
    %173 = vmatpush.msra.mxu0 0.0
    %174 = vmatpush.msra.mxu0 0.0
    %175 = vmatpush.msra.mxu0 0.0
    %176 = vmatpush.msra.mxu0 0.0
    %177 = vmatpush.msra.mxu0 0.0
    %178 = vmatpush.msra.mxu0 0.0
    %179 = vmatpush.msra.mxu0 0.0
    %180 = vmatpush.msra.mxu0 0.0
    %181 = vmatpush.msra.mxu0 0.0
    %182 = vmatpush.msra.mxu0 0.0
    %183 = vmatpush.msra.mxu0 0.0
    %184 = vmatpush.msra.mxu0 0.0
    %185 = vmatpush.msra.mxu0 0.0
    %186 = vmatpush.msra.mxu0 0.0
    %187 = vmatpush.msra.mxu0 0.0
    %v188 = vand.u32 %v93, 4294901760
    %189 = vmatpush.msra.mxu0 %v188
    %v190 = vand.u32 %v90, 4294901760
    %v191 = vsub.f32 %v90, %v190
    %v192 = vand.u32 %v191, 4294901760
    %193 = vmatmul.f32.gmra.mxu0 %v192
    %v194 = vpop.f32.mrf.mxu0
    %v195 = vadd.f32 %v171, %v194
    %196 = vdwg.mxu0
    %197 = vmatpush.msra.mxu0 0.0
    %198 = vmatpush.msra.mxu0 0.0
    %199 = vmatpush.msra.mxu0 0.0
    %200 = vmatpush.msra.mxu0 0.0
    %201 = vmatpush.msra.mxu0 0.0
    %202 = vmatpush.msra.mxu0 0.0
    %203 = vmatpush.msra.mxu0 0.0
    %204 = vmatpush.msra.mxu0 0.0
    %205 = vmatpush.msra.mxu0 0.0
    %206 = vmatpush.msra.mxu0 0.0
    %207 = vmatpush.msra.mxu0 0.0
    %208 = vmatpush.msra.mxu0 0.0
    %209 = vmatpush.msra.mxu0 0.0
    %210 = vmatpush.msra.mxu0 0.0
    %211 = vmatpush.msra.mxu0 0.0
    %v212 = vand.u32 %v93, 4294901760
    %v213 = vsub.f32 %v93, %v212
    %v214 = vand.u32 %v213, 4294901760
    %215 = vmatpush.msra.mxu0 %v214
    %v216 = vand.u32 %v90, 4294901760
    %217 = vmatmul.f32.gmra.mxu0 %v216
    %v218 = vpop.f32.mrf.mxu0
    %v219 = vadd.f32 %v195, %v218
    %220 = vdwg.mxu0
    %221 = vmatpush.msra.mxu0 0.0
    %222 = vmatpush.msra.mxu0 0.0
    %223 = vmatpush.msra.mxu0 0.0
    %224 = vmatpush.msra.mxu0 0.0
    %225 = vmatpush.msra.mxu0 0.0
    %226 = vmatpush.msra.mxu0 0.0
    %227 = vmatpush.msra.mxu0 0.0
    %228 = vmatpush.msra.mxu0 0.0
    %229 = vmatpush.msra.mxu0 0.0
    %230 = vmatpush.msra.mxu0 0.0
    %231 = vmatpush.msra.mxu0 0.0
    %232 = vmatpush.msra.mxu0 0.0
    %233 = vmatpush.msra.mxu0 0.0
    %234 = vmatpush.msra.mxu0 0.0
    %235 = vmatpush.msra.mxu0 0.0
    %v236 = vand.u32 %v93, 4294901760
    %237 = vmatpush.msra.mxu0 %v236
    %v238 = vand.u32 %v90, 4294901760
    %239 = vmatmul.f32.gmra.mxu0 %v238
    %v240 = vpop.f32.mrf.mxu0
    %v241 = vadd.f32 %v219, %v240
    %242 = vdwg.mxu0
    %243 = vmatpush.msra.mxu0 0.0
    %244 = vmatpush.msra.mxu0 0.0
    %245 = vmatpush.msra.mxu0 0.0
    %246 = vmatpush.msra.mxu0 0.0
    %247 = vmatpush.msra.mxu0 0.0
    %248 = vmatpush.msra.mxu0 0.0
    %249 = vmatpush.msra.mxu0 0.0
    %250 = vmatpush.msra.mxu0 0.0
    %251 = vmatpush.msra.mxu0 0.0
    %252 = vmatpush.msra.mxu0 0.0
    %253 = vmatpush.msra.mxu0 0.0
    %254 = vmatpush.msra.mxu0 0.0
    %255 = vmatpush.msra.mxu0 0.0
    %256 = vmatpush.msra.mxu0 0.0
    %257 = vmatpush.msra.mxu0 0.0
    %v258 = vand.u32 %v95, 4294901760
    %259 = vmatpush.msra.mxu0 %v258
    %v260 = vand.u32 %v90, 4294901760
    %v261 = vsub.f32 %v90, %v260
    %v262 = vand.u32 %v261, 4294901760
    %v263 = vsub.f32 %v261, %v262
    %v264 = vand.u32 %v263, 4294901760
    %265 = vmatmul.f32.gmra.mxu0 %v264
    %v266 = vpop.f32.mrf.mxu0
    %v267 = vadd.f32 0.0, %v266
    %268 = vdwg.mxu0
    %269 = vmatpush.msra.mxu0 0.0
    %270 = vmatpush.msra.mxu0 0.0
    %271 = vmatpush.msra.mxu0 0.0
    %272 = vmatpush.msra.mxu0 0.0
    %273 = vmatpush.msra.mxu0 0.0
    %274 = vmatpush.msra.mxu0 0.0
    %275 = vmatpush.msra.mxu0 0.0
    %276 = vmatpush.msra.mxu0 0.0
    %277 = vmatpush.msra.mxu0 0.0
    %278 = vmatpush.msra.mxu0 0.0
    %279 = vmatpush.msra.mxu0 0.0
    %280 = vmatpush.msra.mxu0 0.0
    %281 = vmatpush.msra.mxu0 0.0
    %282 = vmatpush.msra.mxu0 0.0
    %283 = vmatpush.msra.mxu0 0.0
    %v284 = vand.u32 %v95, 4294901760
    %v285 = vsub.f32 %v95, %v284
    %v286 = vand.u32 %v285, 4294901760
    %v287 = vsub.f32 %v285, %v286
    %v288 = vand.u32 %v287, 4294901760
    %289 = vmatpush.msra.mxu0 %v288
    %v290 = vand.u32 %v90, 4294901760
    %291 = vmatmul.f32.gmra.mxu0 %v290
    %v292 = vpop.f32.mrf.mxu0
    %v293 = vadd.f32 %v267, %v292
    %294 = vdwg.mxu0
    %295 = vmatpush.msra.mxu0 0.0
    %296 = vmatpush.msra.mxu0 0.0
    %297 = vmatpush.msra.mxu0 0.0
    %298 = vmatpush.msra.mxu0 0.0
    %299 = vmatpush.msra.mxu0 0.0
    %300 = vmatpush.msra.mxu0 0.0
    %301 = vmatpush.msra.mxu0 0.0
    %302 = vmatpush.msra.mxu0 0.0
    %303 = vmatpush.msra.mxu0 0.0
    %304 = vmatpush.msra.mxu0 0.0
    %305 = vmatpush.msra.mxu0 0.0
    %306 = vmatpush.msra.mxu0 0.0
    %307 = vmatpush.msra.mxu0 0.0
    %308 = vmatpush.msra.mxu0 0.0
    %309 = vmatpush.msra.mxu0 0.0
    %v310 = vand.u32 %v95, 4294901760
    %v311 = vsub.f32 %v95, %v310
    %312 = vmatpush.msra.mxu0 %v311
    %v313 = vand.u32 %v90, 4294901760
    %v314 = vsub.f32 %v90, %v313
    %315 = vmatmul.f32.gmra.mxu0 %v314
    %v316 = vpop.f32.mrf.mxu0
    %v317 = vadd.f32 %v293, %v316
    %318 = vdwg.mxu0
    %319 = vmatpush.msra.mxu0 0.0
    %320 = vmatpush.msra.mxu0 0.0
    %321 = vmatpush.msra.mxu0 0.0
    %322 = vmatpush.msra.mxu0 0.0
    %323 = vmatpush.msra.mxu0 0.0
    %324 = vmatpush.msra.mxu0 0.0
    %325 = vmatpush.msra.mxu0 0.0
    %326 = vmatpush.msra.mxu0 0.0
    %327 = vmatpush.msra.mxu0 0.0
    %328 = vmatpush.msra.mxu0 0.0
    %329 = vmatpush.msra.mxu0 0.0
    %330 = vmatpush.msra.mxu0 0.0
    %331 = vmatpush.msra.mxu0 0.0
    %332 = vmatpush.msra.mxu0 0.0
    %333 = vmatpush.msra.mxu0 0.0
    %v334 = vand.u32 %v95, 4294901760
    %335 = vmatpush.msra.mxu0 %v334
    %v336 = vand.u32 %v90, 4294901760
    %v337 = vsub.f32 %v90, %v336
    %v338 = vand.u32 %v337, 4294901760
    %339 = vmatmul.f32.gmra.mxu0 %v338
    %v340 = vpop.f32.mrf.mxu0
    %v341 = vadd.f32 %v317, %v340
    %342 = vdwg.mxu0
    %343 = vmatpush.msra.mxu0 0.0
    %344 = vmatpush.msra.mxu0 0.0
    %345 = vmatpush.msra.mxu0 0.0
    %346 = vmatpush.msra.mxu0 0.0
    %347 = vmatpush.msra.mxu0 0.0
    %348 = vmatpush.msra.mxu0 0.0
    %349 = vmatpush.msra.mxu0 0.0
    %350 = vmatpush.msra.mxu0 0.0
    %351 = vmatpush.msra.mxu0 0.0
    %352 = vmatpush.msra.mxu0 0.0
    %353 = vmatpush.msra.mxu0 0.0
    %354 = vmatpush.msra.mxu0 0.0
    %355 = vmatpush.msra.mxu0 0.0
    %356 = vmatpush.msra.mxu0 0.0
    %357 = vmatpush.msra.mxu0 0.0
    %v358 = vand.u32 %v95, 4294901760
    %v359 = vsub.f32 %v95, %v358
    %v360 = vand.u32 %v359, 4294901760
    %361 = vmatpush.msra.mxu0 %v360
    %v362 = vand.u32 %v90, 4294901760
    %363 = vmatmul.f32.gmra.mxu0 %v362
    %v364 = vpop.f32.mrf.mxu0
    %v365 = vadd.f32 %v341, %v364
    %366 = vdwg.mxu0
    %367 = vmatpush.msra.mxu0 0.0
    %368 = vmatpush.msra.mxu0 0.0
    %369 = vmatpush.msra.mxu0 0.0
    %370 = vmatpush.msra.mxu0 0.0
    %371 = vmatpush.msra.mxu0 0.0
    %372 = vmatpush.msra.mxu0 0.0
    %373 = vmatpush.msra.mxu0 0.0
    %374 = vmatpush.msra.mxu0 0.0
    %375 = vmatpush.msra.mxu0 0.0
    %376 = vmatpush.msra.mxu0 0.0
    %377 = vmatpush.msra.mxu0 0.0
    %378 = vmatpush.msra.mxu0 0.0
    %379 = vmatpush.msra.mxu0 0.0
    %380 = vmatpush.msra.mxu0 0.0
    %381 = vmatpush.msra.mxu0 0.0
    %v382 = vand.u32 %v95, 4294901760
    %383 = vmatpush.msra.mxu0 %v382
    %v384 = vand.u32 %v90, 4294901760
    %385 = vmatmul.f32.gmra.mxu0 %v384
    %v386 = vpop.f32.mrf.mxu0
    %v387 = vadd.f32 %v365, %v386
    %388 = vdwg.mxu0
    %v389 = vsub.f32 %v58, %v241
    %v390 = vmul.f32 %v389, 1.442695
    %v391 = vpow.pop %v390
    %v392 = vld [vmem:[#allocation5] sm:$0xff]
    %v393 = vld [vmem:[#allocation5 + $0x8] sm:$0xff]
    %v394 = vld [vmem:[#allocation5 + $0x10] sm:$0xff]
    %v395 = vld [vmem:[#allocation5 + $0x18] sm:$0xff]
    %v396 = vld [vmem:[#allocation5 + $0x20] sm:$0xff]
    %v397 = vld [vmem:[#allocation5 + $0x28] sm:$0xff]
    %v398 = vld [vmem:[#allocation5 + $0x30] sm:$0xff]
    %v399 = vld [vmem:[#allocation5 + $0x38] sm:$0xff]
    %v400 = vld [vmem:[#allocation5 + $0x40] sm:$0xff]
    %v401 = vld [vmem:[#allocation5 + $0x48] sm:$0xff]
    %v402 = vld [vmem:[#allocation5 + $0x50] sm:$0xff]
    %v403 = vld [vmem:[#allocation5 + $0x58] sm:$0xff]
    %v404 = vld [vmem:[#allocation5 + $0x60] sm:$0xff]
    %v405 = vld [vmem:[#allocation5 + $0x68] sm:$0xff]
    %v406 = vld [vmem:[#allocation5 + $0x70] sm:$0xff]
    %v407 = vld [vmem:[#allocation5 + $0x78] sm:$0xff]
    %v408 = vand.u32 %v407, 4294901760
    %409 = vmatpush.msra.mxu0 %v408
    %v410 = vand.u32 %v406, 4294901760
    %411 = vmatpush.msra.mxu0 %v410
    %v412 = vand.u32 %v405, 4294901760
    %413 = vmatpush.msra.mxu0 %v412
    %v414 = vand.u32 %v404, 4294901760
    %415 = vmatpush.msra.mxu0 %v414
    %v416 = vand.u32 %v403, 4294901760
    %417 = vmatpush.msra.mxu0 %v416
    %v418 = vand.u32 %v402, 4294901760
    %419 = vmatpush.msra.mxu0 %v418
    %v420 = vand.u32 %v401, 4294901760
    %421 = vmatpush.msra.mxu0 %v420
    %v422 = vand.u32 %v400, 4294901760
    %423 = vmatpush.msra.mxu0 %v422
    %v424 = vand.u32 %v399, 4294901760
    %425 = vmatpush.msra.mxu0 %v424
    %v426 = vand.u32 %v398, 4294901760
    %427 = vmatpush.msra.mxu0 %v426
    %v428 = vand.u32 %v397, 4294901760
    %429 = vmatpush.msra.mxu0 %v428
    %v430 = vand.u32 %v396, 4294901760
    %431 = vmatpush.msra.mxu0 %v430
    %v432 = vand.u32 %v395, 4294901760
    %433 = vmatpush.msra.mxu0 %v432
    %v434 = vand.u32 %v394, 4294901760
    %435 = vmatpush.msra.mxu0 %v434
    %v436 = vand.u32 %v393, 4294901760
    %437 = vmatpush.msra.mxu0 %v436
    %v438 = vand.u32 %v392, 4294901760
    %439 = vmatpush.msra.mxu0 %v438
    %v440 = vand.u32 %v391, 4294901760
    %v441 = vsub.f32 %v391, %v440
    %v442 = vand.u32 %v441, 4294901760
    %v443 = vsub.f32 %v441, %v442
    %v444 = vand.u32 %v443, 4294901760
    %445 = vmatmul.f32.gmra.mxu0 %v444
    %v446 = vpop.f32.mrf.mxu0
    %v447 = vadd.f32 0.0, %v446
    %448 = vdwg.mxu0
    %v449 = vand.u32 %v407, 4294901760
    %v450 = vsub.f32 %v407, %v449
    %v451 = vand.u32 %v450, 4294901760
    %v452 = vsub.f32 %v450, %v451
    %v453 = vand.u32 %v452, 4294901760
    %454 = vmatpush.msra.mxu0 %v453
    %v455 = vand.u32 %v406, 4294901760
    %v456 = vsub.f32 %v406, %v455
    %v457 = vand.u32 %v456, 4294901760
    %v458 = vsub.f32 %v456, %v457
    %v459 = vand.u32 %v458, 4294901760
    %460 = vmatpush.msra.mxu0 %v459
    %v461 = vand.u32 %v405, 4294901760
    %v462 = vsub.f32 %v405, %v461
    %v463 = vand.u32 %v462, 4294901760
    %v464 = vsub.f32 %v462, %v463
    %v465 = vand.u32 %v464, 4294901760
    %466 = vmatpush.msra.mxu0 %v465
    %v467 = vand.u32 %v404, 4294901760
    %v468 = vsub.f32 %v404, %v467
    %v469 = vand.u32 %v468, 4294901760
    %v470 = vsub.f32 %v468, %v469
    %v471 = vand.u32 %v470, 4294901760
    %472 = vmatpush.msra.mxu0 %v471
    %v473 = vand.u32 %v403, 4294901760
    %v474 = vsub.f32 %v403, %v473
    %v475 = vand.u32 %v474, 4294901760
    %v476 = vsub.f32 %v474, %v475
    %v477 = vand.u32 %v476, 4294901760
    %478 = vmatpush.msra.mxu0 %v477
    %v479 = vand.u32 %v402, 4294901760
    %v480 = vsub.f32 %v402, %v479
    %v481 = vand.u32 %v480, 4294901760
    %v482 = vsub.f32 %v480, %v481
    %v483 = vand.u32 %v482, 4294901760
    %484 = vmatpush.msra.mxu0 %v483
    %v485 = vand.u32 %v401, 4294901760
    %v486 = vsub.f32 %v401, %v485
    %v487 = vand.u32 %v486, 4294901760
    %v488 = vsub.f32 %v486, %v487
    %v489 = vand.u32 %v488, 4294901760
    %490 = vmatpush.msra.mxu0 %v489
    %v491 = vand.u32 %v400, 4294901760
    %v492 = vsub.f32 %v400, %v491
    %v493 = vand.u32 %v492, 4294901760
    %v494 = vsub.f32 %v492, %v493
    %v495 = vand.u32 %v494, 4294901760
    %496 = vmatpush.msra.mxu0 %v495
    %v497 = vand.u32 %v399, 4294901760
    %v498 = vsub.f32 %v399, %v497
    %v499 = vand.u32 %v498, 4294901760
    %v500 = vsub.f32 %v498, %v499
    %v501 = vand.u32 %v500, 4294901760
    %502 = vmatpush.msra.mxu0 %v501
    %v503 = vand.u32 %v398, 4294901760
    %v504 = vsub.f32 %v398, %v503
    %v505 = vand.u32 %v504, 4294901760
    %v506 = vsub.f32 %v504, %v505
    %v507 = vand.u32 %v506, 4294901760
    %508 = vmatpush.msra.mxu0 %v507
    %v509 = vand.u32 %v397, 4294901760
    %v510 = vsub.f32 %v397, %v509
    %v511 = vand.u32 %v510, 4294901760
    %v512 = vsub.f32 %v510, %v511
    %v513 = vand.u32 %v512, 4294901760
    %514 = vmatpush.msra.mxu0 %v513
    %v515 = vand.u32 %v396, 4294901760
    %v516 = vsub.f32 %v396, %v515
    %v517 = vand.u32 %v516, 4294901760
    %v518 = vsub.f32 %v516, %v517
    %v519 = vand.u32 %v518, 4294901760
    %520 = vmatpush.msra.mxu0 %v519
    %v521 = vand.u32 %v395, 4294901760
    %v522 = vsub.f32 %v395, %v521
    %v523 = vand.u32 %v522, 4294901760
    %v524 = vsub.f32 %v522, %v523
    %v525 = vand.u32 %v524, 4294901760
    %526 = vmatpush.msra.mxu0 %v525
    %v527 = vand.u32 %v394, 4294901760
    %v528 = vsub.f32 %v394, %v527
    %v529 = vand.u32 %v528, 4294901760
    %v530 = vsub.f32 %v528, %v529
    %v531 = vand.u32 %v530, 4294901760
    %532 = vmatpush.msra.mxu0 %v531
    %v533 = vand.u32 %v393, 4294901760
    %v534 = vsub.f32 %v393, %v533
    %v535 = vand.u32 %v534, 4294901760
    %v536 = vsub.f32 %v534, %v535
    %v537 = vand.u32 %v536, 4294901760
    %538 = vmatpush.msra.mxu0 %v537
    %v539 = vand.u32 %v392, 4294901760
    %v540 = vsub.f32 %v392, %v539
    %v541 = vand.u32 %v540, 4294901760
    %v542 = vsub.f32 %v540, %v541
    %v543 = vand.u32 %v542, 4294901760
    %544 = vmatpush.msra.mxu0 %v543
    %v545 = vand.u32 %v391, 4294901760
    %546 = vmatmul.f32.gmra.mxu0 %v545
    %v547 = vpop.f32.mrf.mxu0
    %v548 = vadd.f32 %v447, %v547
    %549 = vdwg.mxu0
    %v550 = vand.u32 %v407, 4294901760
    %v551 = vsub.f32 %v407, %v550
    %552 = vmatpush.msra.mxu0 %v551
    %v553 = vand.u32 %v406, 4294901760
    %v554 = vsub.f32 %v406, %v553
    %555 = vmatpush.msra.mxu0 %v554
    %v556 = vand.u32 %v405, 4294901760
    %v557 = vsub.f32 %v405, %v556
    %558 = vmatpush.msra.mxu0 %v557
    %v559 = vand.u32 %v404, 4294901760
    %v560 = vsub.f32 %v404, %v559
    %561 = vmatpush.msra.mxu0 %v560
    %v562 = vand.u32 %v403, 4294901760
    %v563 = vsub.f32 %v403, %v562
    %564 = vmatpush.msra.mxu0 %v563
    %v565 = vand.u32 %v402, 4294901760
    %v566 = vsub.f32 %v402, %v565
    %567 = vmatpush.msra.mxu0 %v566
    %v568 = vand.u32 %v401, 4294901760
    %v569 = vsub.f32 %v401, %v568
    %570 = vmatpush.msra.mxu0 %v569
    %v571 = vand.u32 %v400, 4294901760
    %v572 = vsub.f32 %v400, %v571
    %573 = vmatpush.msra.mxu0 %v572
    %v574 = vand.u32 %v399, 4294901760
    %v575 = vsub.f32 %v399, %v574
    %576 = vmatpush.msra.mxu0 %v575
    %v577 = vand.u32 %v398, 4294901760
    %v578 = vsub.f32 %v398, %v577
    %579 = vmatpush.msra.mxu0 %v578
    %v580 = vand.u32 %v397, 4294901760
    %v581 = vsub.f32 %v397, %v580
    %582 = vmatpush.msra.mxu0 %v581
    %v583 = vand.u32 %v396, 4294901760
    %v584 = vsub.f32 %v396, %v583
    %585 = vmatpush.msra.mxu0 %v584
    %v586 = vand.u32 %v395, 4294901760
    %v587 = vsub.f32 %v395, %v586
    %588 = vmatpush.msra.mxu0 %v587
    %v589 = vand.u32 %v394, 4294901760
    %v590 = vsub.f32 %v394, %v589
    %591 = vmatpush.msra.mxu0 %v590
    %v592 = vand.u32 %v393, 4294901760
    %v593 = vsub.f32 %v393, %v592
    %594 = vmatpush.msra.mxu0 %v593
    %v595 = vand.u32 %v392, 4294901760
    %v596 = vsub.f32 %v392, %v595
    %597 = vmatpush.msra.mxu0 %v596
    %v598 = vand.u32 %v391, 4294901760
    %v599 = vsub.f32 %v391, %v598
    %600 = vmatmul.f32.gmra.mxu0 %v599
    %v601 = vpop.f32.mrf.mxu0
    %v602 = vadd.f32 %v548, %v601
    %603 = vdwg.mxu0
    %v604 = vand.u32 %v407, 4294901760
    %605 = vmatpush.msra.mxu0 %v604
    %v606 = vand.u32 %v406, 4294901760
    %607 = vmatpush.msra.mxu0 %v606
    %v608 = vand.u32 %v405, 4294901760
    %609 = vmatpush.msra.mxu0 %v608
    %v610 = vand.u32 %v404, 4294901760
    %611 = vmatpush.msra.mxu0 %v610
    %v612 = vand.u32 %v403, 4294901760
    %613 = vmatpush.msra.mxu0 %v612
    %v614 = vand.u32 %v402, 4294901760
    %615 = vmatpush.msra.mxu0 %v614
    %v616 = vand.u32 %v401, 4294901760
    %617 = vmatpush.msra.mxu0 %v616
    %v618 = vand.u32 %v400, 4294901760
    %619 = vmatpush.msra.mxu0 %v618
    %v620 = vand.u32 %v399, 4294901760
    %621 = vmatpush.msra.mxu0 %v620
    %v622 = vand.u32 %v398, 4294901760
    %623 = vmatpush.msra.mxu0 %v622
    %v624 = vand.u32 %v397, 4294901760
    %625 = vmatpush.msra.mxu0 %v624
    %v626 = vand.u32 %v396, 4294901760
    %627 = vmatpush.msra.mxu0 %v626
    %v628 = vand.u32 %v395, 4294901760
    %629 = vmatpush.msra.mxu0 %v628
    %v630 = vand.u32 %v394, 4294901760
    %631 = vmatpush.msra.mxu0 %v630
    %v632 = vand.u32 %v393, 4294901760
    %633 = vmatpush.msra.mxu0 %v632
    %v634 = vand.u32 %v392, 4294901760
    %635 = vmatpush.msra.mxu0 %v634
    %v636 = vand.u32 %v391, 4294901760
    %v637 = vsub.f32 %v391, %v636
    %v638 = vand.u32 %v637, 4294901760
    %639 = vmatmul.f32.gmra.mxu0 %v638
    %v640 = vpop.f32.mrf.mxu0
    %v641 = vadd.f32 %v602, %v640
    %642 = vdwg.mxu0
    %v643 = vand.u32 %v407, 4294901760
    %v644 = vsub.f32 %v407, %v643
    %v645 = vand.u32 %v644, 4294901760
    %646 = vmatpush.msra.mxu0 %v645
    %v647 = vand.u32 %v406, 4294901760
    %v648 = vsub.f32 %v406, %v647
    %v649 = vand.u32 %v648, 4294901760
    %650 = vmatpush.msra.mxu0 %v649
    %v651 = vand.u32 %v405, 4294901760
    %v652 = vsub.f32 %v405, %v651
    %v653 = vand.u32 %v652, 4294901760
    %654 = vmatpush.msra.mxu0 %v653
    %v655 = vand.u32 %v404, 4294901760
    %v656 = vsub.f32 %v404, %v655
    %v657 = vand.u32 %v656, 4294901760
    %658 = vmatpush.msra.mxu0 %v657
    %v659 = vand.u32 %v403, 4294901760
    %v660 = vsub.f32 %v403, %v659
    %v661 = vand.u32 %v660, 4294901760
    %662 = vmatpush.msra.mxu0 %v661
    %v663 = vand.u32 %v402, 4294901760
    %v664 = vsub.f32 %v402, %v663
    %v665 = vand.u32 %v664, 4294901760
    %666 = vmatpush.msra.mxu0 %v665
    %v667 = vand.u32 %v401, 4294901760
    %v668 = vsub.f32 %v401, %v667
    %v669 = vand.u32 %v668, 4294901760
    %670 = vmatpush.msra.mxu0 %v669
    %v671 = vand.u32 %v400, 4294901760
    %v672 = vsub.f32 %v400, %v671
    %v673 = vand.u32 %v672, 4294901760
    %674 = vmatpush.msra.mxu0 %v673
    %v675 = vand.u32 %v399, 4294901760
    %v676 = vsub.f32 %v399, %v675
    %v677 = vand.u32 %v676, 4294901760
    %678 = vmatpush.msra.mxu0 %v677
    %v679 = vand.u32 %v398, 4294901760
    %v680 = vsub.f32 %v398, %v679
    %v681 = vand.u32 %v680, 4294901760
    %682 = vmatpush.msra.mxu0 %v681
    %v683 = vand.u32 %v397, 4294901760
    %v684 = vsub.f32 %v397, %v683
    %v685 = vand.u32 %v684, 4294901760
    %686 = vmatpush.msra.mxu0 %v685
    %v687 = vand.u32 %v396, 4294901760
    %v688 = vsub.f32 %v396, %v687
    %v689 = vand.u32 %v688, 4294901760
    %690 = vmatpush.msra.mxu0 %v689
    %v691 = vand.u32 %v395, 4294901760
    %v692 = vsub.f32 %v395, %v691
    %v693 = vand.u32 %v692, 4294901760
    %694 = vmatpush.msra.mxu0 %v693
    %v695 = vand.u32 %v394, 4294901760
    %v696 = vsub.f32 %v394, %v695
    %v697 = vand.u32 %v696, 4294901760
    %698 = vmatpush.msra.mxu0 %v697
    %v699 = vand.u32 %v393, 4294901760
    %v700 = vsub.f32 %v393, %v699
    %v701 = vand.u32 %v700, 4294901760
    %702 = vmatpush.msra.mxu0 %v701
    %v703 = vand.u32 %v392, 4294901760
    %v704 = vsub.f32 %v392, %v703
    %v705 = vand.u32 %v704, 4294901760
    %706 = vmatpush.msra.mxu0 %v705
    %v707 = vand.u32 %v391, 4294901760
    %708 = vmatmul.f32.gmra.mxu0 %v707
    %v709 = vpop.f32.mrf.mxu0
    %v710 = vadd.f32 %v641, %v709
    %711 = vdwg.mxu0
    %v712 = vand.u32 %v407, 4294901760
    %713 = vmatpush.msra.mxu0 %v712
    %v714 = vand.u32 %v406, 4294901760
    %715 = vmatpush.msra.mxu0 %v714
    %v716 = vand.u32 %v405, 4294901760
    %717 = vmatpush.msra.mxu0 %v716
    %v718 = vand.u32 %v404, 4294901760
    %719 = vmatpush.msra.mxu0 %v718
    %v720 = vand.u32 %v403, 4294901760
    %721 = vmatpush.msra.mxu0 %v720
    %v722 = vand.u32 %v402, 4294901760
    %723 = vmatpush.msra.mxu0 %v722
    %v724 = vand.u32 %v401, 4294901760
    %725 = vmatpush.msra.mxu0 %v724
    %v726 = vand.u32 %v400, 4294901760
    %727 = vmatpush.msra.mxu0 %v726
    %v728 = vand.u32 %v399, 4294901760
    %729 = vmatpush.msra.mxu0 %v728
    %v730 = vand.u32 %v398, 4294901760
    %731 = vmatpush.msra.mxu0 %v730
    %v732 = vand.u32 %v397, 4294901760
    %733 = vmatpush.msra.mxu0 %v732
    %v734 = vand.u32 %v396, 4294901760
    %735 = vmatpush.msra.mxu0 %v734
    %v736 = vand.u32 %v395, 4294901760
    %737 = vmatpush.msra.mxu0 %v736
    %v738 = vand.u32 %v394, 4294901760
    %739 = vmatpush.msra.mxu0 %v738
    %v740 = vand.u32 %v393, 4294901760
    %741 = vmatpush.msra.mxu0 %v740
    %v742 = vand.u32 %v392, 4294901760
    %743 = vmatpush.msra.mxu0 %v742
    %v744 = vand.u32 %v391, 4294901760
    %745 = vmatmul.f32.gmra.mxu0 %v744
    %v746 = vpop.f32.mrf.mxu0
    %v747 = vadd.f32 %v710, %v746
    %748 = vdwg.mxu0
    %v749 = vlog2.pop %v747
    %v750 = vmul.f32 %v749, 0.6931472
    %v751 = vadd.f32 %v387, %v750
    %752 = vst [vmem:[#allocation8] sm:$0xff] %v751
    // Predicated region
    $region26: #{tpu_custom_call.1} parent=1 // pred_check
      _
    $region27: #{tpu_custom_call.1} parent=1 // pred_check_branch
      %754 = sbr.rel (0) target = $region29
    $region28: #{tpu_custom_call.1} parent=1 // pred_region
      %756 = vsyncadd [#allocation4], 0
      %s758 = sshll.u32 [#allocation8], 4
      %s759 = int_to_ptr.vmem [resolvable:$true] %s758
      %s760 = sshll.u32 %s3, 4
      %s761 = int_to_ptr.hbm [resolvable:$true] %s760
      %763 = dma.vmem_to_hbm [thread:$0]  %s759, 128, %s761, [#allocation4]
    $region29: #{tpu_custom_call.1} parent=1 // pred_fallthru
      _
    // Predicated region
    $region30: #{tpu_custom_call.1} parent=1 // pred_check
      _
    $region31: #{tpu_custom_call.1} parent=1 // pred_check_branch
      %765 = sbr.rel (0) target = $region33
    $region32: #{tpu_custom_call.1} parent=1 // pred_region
      %767 = dma.done [#allocation4], 128
    $region33: #{tpu_custom_call.1} parent=1 // pred_fallthru
      _
    %768 = vsyncpa [#allocation3], 1
    %769 = vsyncpa [#allocation6], 1
    %770 = vsyncpa [#allocation4], 1

</llo_original>
